<compile_context>
chip_gen: v7x
topology: tpu7x:2x2x1
jax: 0.10.0
libtpu: 0.0.40
codegen_flags: <defaults>
</compile_context>

<pallas_src>
import math
from functools import partial

import jax
import jax.numpy as jnp
from jax.experimental import pallas as pl
from jax.experimental.pallas import tpu as pltpu


def _cdiv(a, b):
    return (a + b - 1) // b


def _round_up(a, m):
    return _cdiv(a, m) * m


def _gate_from_sums(taps_ref, s, use_sigmoid):
    """Channel-axis conv + gate from per-channel pooled sums.

    taps_ref: SMEM (k,) f32 conv taps, pre-scaled by 1/(H*W).
    s:        (TB, C, 1) f32 per-channel sums.
    Returns   (TB, C, 1) f32 gate.
    The k-tap conv is k shifted adds along the channel (sublane) axis; k is
    tiny (1..9) and static so this unrolls at trace time.  (Concatenate +
    small sublane slices are negligible for ECA channel counts.)
    """
    k = taps_ref.shape[0]
    pad = k // 2
    tb, c, _ = s.shape
    if pad > 0:
        z = jnp.zeros((tb, pad, 1), jnp.float32)
        s_pad = jnp.concatenate([z, s, z], axis=1)            # (TB, C+2p, 1)
    else:
        s_pad = s
    acc = taps_ref[0] * s_pad[:, 0:c, :]
    for j in range(1, k):
        acc = acc + taps_ref[j] * s_pad[:, j:j + c, :]
    if use_sigmoid:
        return jax.nn.sigmoid(acc)
    # h_sigmoid: ReLU6(x + 3) / 6
    return jnp.clip(acc + 3.0, 0.0, 6.0) * (1.0 / 6.0)


def _eca_fused_kernel(taps_ref, x_ref, o_ref, *, use_sigmoid=True):
    # Single-pass: pool -> conv -> gate -> scale on one (TB, C, HW) slab.
    # jnp.sum(dtype=f32) requests f32 accumulation without an explicit full
    # f32 copy of x.  TODO(synk): confirm via pl.lower_as_mlir that the cast
    # fuses into the reduction for sub-32-bit inputs; if not, switch to a
    # chunk-wise fori_loop accumulation.
    s = jnp.sum(x_ref[...], axis=-1, keepdims=True, dtype=jnp.float32)
    gate = _gate_from_sums(taps_ref, s, use_sigmoid)          # (TB, C, 1) f32
    # Re-read x_ref for the multiply (short live range); multiply in x dtype.
    o_ref[...] = (x_ref[...] * gate.astype(o_ref.dtype)).astype(o_ref.dtype)


def _eca_pool_gate_kernel(taps_ref, x_ref, gate_ref, sum_ref, *,
                          hw, chunk, use_sigmoid=True):
    # Phase-0 kernel of the chunked path: accumulate per-channel f32 sums over
    # HW chunks, compute the gate once at the last chunk.
    c = pl.program_id(1)

    @pl.when(c == 0)
    def _init():
        sum_ref[...] = jnp.zeros_like(sum_ref)

    x = x_ref[...]                                            # (1, C, chunk)
    if hw % chunk != 0:
        # Last chunk extends past HW; mask the out-of-bounds (garbage) lanes.
        lane = jax.lax.broadcasted_iota(jnp.int32, x.shape, dimension=2)
        valid = (c * chunk + lane) < hw
        part = jnp.sum(jnp.where(valid, x, 0), axis=-1, keepdims=True,
                       dtype=jnp.float32)
    else:
        part = jnp.sum(x, axis=-1, keepdims=True, dtype=jnp.float32)
    sum_ref[...] += part

    @pl.when(c == pl.num_programs(1) - 1)
    def _finalize():
        gate_ref[...] = _gate_from_sums(taps_ref, sum_ref[...], use_sigmoid)


def _eca_scale_kernel(gate_ref, x_ref, o_ref):
    # Phase-1 kernel of the chunked path: broadcast multiply per HW chunk.
    g = gate_ref[...]                                         # (1, C, 1) f32
    o_ref[...] = (x_ref[...] * g.astype(o_ref.dtype)).astype(o_ref.dtype)


def eca_layer(x, conv_weight, use_sigmoid=True, max_block_bytes=None):
    """x: (B, C, H, W).  conv_weight: (1, 1, k) float32 (PyTorch Conv1d layout)."""
    B, C, H, W = x.shape
    HW = H * W
    itemsize = jnp.dtype(x.dtype).itemsize
    x_flat = x.reshape(B, C, HW)

    # Fold the 1/(H*W) average-pool scale into the conv taps (conv is linear).
    taps = conv_weight.reshape(-1).astype(jnp.float32) / float(HW)

    # ---- VMEM / block budgets (v7x has only 64 MiB VMEM per TensorCore) ----
    try:
        vmem_cap = int(pltpu.get_tpu_info().vmem_capacity_bytes)
    except Exception:
        vmem_cap = 64 << 20                     # conservative fallback (v7x)
    vmem_budget = max(16 << 20, (vmem_cap * 3) // 4)
    if max_block_bytes is None:
        # 2x(in) + 2x(out) double-buffers + temps must fit the budget.
        block_budget = min(8 << 20, vmem_budget // 6)
    else:
        block_budget = int(max_block_bytes)

    TARGET_STEPS = 8            # >= 3-4 pipelined steps per TensorCore (v7x)
    slab_bytes = C * HW * itemsize
    total_bytes = B * slab_bytes
    small_total = total_bytes <= (1 << 20)      # pipelining irrelevant below this
    use_fused = (slab_bytes <= block_budget) and (B >= 4 or small_total)

    if use_fused:
        # ---- single fused pass: one HBM read + one HBM write of x ----------
        max_tb_steps = max(1, B // min(B, TARGET_STEPS))   # keep enough steps
        TB = 1
        for d in range(1, B + 1):
            if B % d == 0 and d <= max_tb_steps and d * slab_bytes <= block_budget:
                TB = d
        grid = (B // TB,)
        block_bytes = TB * slab_bytes
        vmem_limit = int(min(max(4 * block_bytes + (4 << 20), 16 << 20),
                             vmem_budget))

        out_flat = pl.pallas_call(
            partial(_eca_fused_kernel, use_sigmoid=use_sigmoid),
            out_shape=jax.ShapeDtypeStruct((B, C, HW), x.dtype),
            grid_spec=pltpu.PrefetchScalarGridSpec(
                num_scalar_prefetch=0,
                grid=grid,
                in_specs=[
                    pl.BlockSpec(memory_space=pltpu.MemorySpace.SMEM),  # taps
                    pl.BlockSpec((TB, C, HW), lambda b: (b, 0, 0)),     # x
                ],
                out_specs=pl.BlockSpec((TB, C, HW), lambda b: (b, 0, 0)),
            ),
            compiler_params=pltpu.CompilerParams(
                dimension_semantics=("parallel",),
                vmem_limit_bytes=vmem_limit),
        )(taps, x_flat)
        return out_flat.reshape(B, C, H, W)

    # ---- chunked two-kernel path (2 reads + 1 write of x) ------------------
    col_bytes = C * itemsize
    max_chunk_budget = max(128, ((block_budget // col_bytes) // 128) * 128)
    want_chunks = max(1, _cdiv(TARGET_STEPS, B))
    chunk_steps = _round_up(_cdiv(HW, want_chunks), 128)
    chunk = max(128, min(max_chunk_budget, chunk_steps, _round_up(HW, 128)))
    n_chunks = _cdiv(HW, chunk)
    # TODO(synk): if C alone is so large that a single 128-lane chunk exceeds
    # the block budget, add a channel-split grid axis as well.

    chunk_bytes = C * chunk * itemsize
    pool_limit = int(min(max(2 * chunk_bytes + (2 << 20), 16 << 20), vmem_budget))
    scale_limit = int(min(max(4 * chunk_bytes + (2 << 20), 16 << 20), vmem_budget))

    gate = pl.pallas_call(
        partial(_eca_pool_gate_kernel, hw=HW, chunk=chunk,
                use_sigmoid=use_sigmoid),
        out_shape=jax.ShapeDtypeStruct((B, C, 1), jnp.float32),
        grid_spec=pltpu.PrefetchScalarGridSpec(
            num_scalar_prefetch=0,
            grid=(B, n_chunks),
            in_specs=[
                pl.BlockSpec(memory_space=pltpu.MemorySpace.SMEM),      # taps
                pl.BlockSpec((1, C, chunk), lambda b, c: (b, 0, c)),    # x chunk
            ],
            out_specs=pl.BlockSpec((1, C, 1), lambda b, c: (b, 0, 0)),  # gate
            scratch_shapes=[pltpu.VMEM((1, C, 1), jnp.float32)],
        ),
        compiler_params=pltpu.CompilerParams(
            dimension_semantics=("parallel", "arbitrary"),
            vmem_limit_bytes=pool_limit),
    )(taps, x_flat)

    out_flat = pl.pallas_call(
        _eca_scale_kernel,
        out_shape=jax.ShapeDtypeStruct((B, C, HW), x.dtype),
        grid_spec=pltpu.PrefetchScalarGridSpec(
            num_scalar_prefetch=0,
            grid=(B, n_chunks),
            in_specs=[
                pl.BlockSpec((1, C, 1), lambda b, c: (b, 0, 0)),        # gate
                pl.BlockSpec((1, C, chunk), lambda b, c: (b, 0, c)),    # x chunk
            ],
            out_specs=pl.BlockSpec((1, C, chunk), lambda b, c: (b, 0, c)),
        ),
        compiler_params=pltpu.CompilerParams(
            dimension_semantics=("parallel", "parallel"),
            vmem_limit_bytes=scale_limit),
    )(gate, x_flat)
    return out_flat.reshape(B, C, H, W)


def make_eca_params(channel, gamma=2, b=1, key=None):
    """Deterministic init matching ECALayer.__init__ kernel-size logic."""
    t = int(abs((math.log(channel, 2) + b) / gamma))
    k = t if t % 2 else t + 1
    if key is None:
        key = jax.random.PRNGKey(0)
    # Conv1d(1, 1, k, bias=False) weight shape: (out_ch=1, in_ch=1, k)
    return jax.random.normal(key, (1, 1, k), dtype=jnp.float32) * 0.3


def eca_reference(x, conv_weight, use_sigmoid=True):
    """Pure-JAX reference for sanity checking."""
    B, C, H, W = x.shape
    y = jnp.mean(x.astype(jnp.float32), axis=(2, 3))          # (B, C)
    w = conv_weight.reshape(-1).astype(jnp.float32)
    k = w.shape[0]
    pad = k // 2
    yp = jnp.pad(y, ((0, 0), (pad, pad)))
    conv = sum(w[j] * yp[:, j:j + C] for j in range(k))       # (B, C)
    if use_sigmoid:
        gate = jax.nn.sigmoid(conv)
    else:
        gate = jnp.clip(conv + 3.0, 0.0, 6.0) / 6.0
    gate = gate[:, :, None, None]
    return x * gate.astype(x.dtype)


if __name__ == "__main__":
    key = jax.random.PRNGKey(0)
    cases = [
        # (shape, use_sigmoid, max_block_bytes override)
        ((2, 16, 16, 16), True, None),       # fused path, lane-dense HW
        ((2, 16, 7, 7), True, None),         # fused path, ragged lane tail (HW=49)
        ((2, 16, 7, 7), False, None),        # h_sigmoid gate variant
        ((2, 16, 24, 24), True, 16 * 1024),  # forces chunked 2-kernel path (ragged last chunk)
    ]
    for (B, C, H, W), use_sig, mbb in cases:
        key, kx, kw = jax.random.split(key, 3)
        x = jax.random.normal(kx, (B, C, H, W), dtype=jnp.float32)
        conv_w = make_eca_params(C, key=kw)

        out = jax.block_until_ready(
            eca_layer(x, conv_w, use_sigmoid=use_sig, max_block_bytes=mbb))
        ref = eca_reference(x, conv_w, use_sigmoid=use_sig)

        assert out.shape == (B, C, H, W)
        assert jnp.allclose(out, ref, atol=1e-5, rtol=1e-5), "mismatch vs reference"
    print("KERNEL_OK")
</pallas_src>

<mosaic_0001>
module attributes {stable_mosaic.version = 11 : i64} {
  func.func @_eca_fused_kernel(%arg0: i32, %arg1: memref<3xf32, #tpu.memory_space<smem>>, %arg2: memref<1x16x256xf32, #tpu.memory_space<vmem>>, %arg3: memref<1x16x256xf32, #tpu.memory_space<vmem>>) attributes {dimension_semantics = [#tpu.dimension_semantics<parallel>], iteration_bounds = array<i64: 2>, scalar_prefetch = 0 : i64, scratch_operands = 0 : i64, tpu.core_type = #tpu.core_type<tc>, window_params = [{transform_indices = @transform_0, window_bounds = array<i64: 3>}, {transform_indices = @transform_1, window_bounds = array<i64: 1, 16, 256>}, {transform_indices = @transform_2, window_bounds = array<i64: 1, 16, 256>}]} {
    %c0 = arith.constant 0 : index
    %c0_0 = arith.constant 0 : index
    %c0_1 = arith.constant 0 : index
    %0 = vector.load %arg2[%c0, %c0_0, %c0_1] : memref<1x16x256xf32, #tpu.memory_space<vmem>>, vector<1x16x256xf32>
    %cst = arith.constant dense<0.000000e+00> : vector<1x16xf32>
    %1 = vector.multi_reduction <add>, %0, %cst [2] : vector<1x16x256xf32> to vector<1x16xf32>
    %2 = vector.shape_cast %1 : vector<1x16xf32> to vector<1x16x1xf32>
    %cst_2 = arith.constant 0.000000e+00 : f32
    %3 = vector.broadcast %cst_2 : f32 to vector<1x1x1xf32>
    %4 = tpu.concatenate %3, %2, %3 in 1 : vector<1x1x1xf32>, vector<1x16x1xf32>, vector<1x1x1xf32> -> vector<1x18x1xf32>
    %c0_3 = arith.constant 0 : index
    %5 = memref.load %arg1[%c0_3] : memref<3xf32, #tpu.memory_space<smem>>
    %6 = vector.extract_strided_slice %4 {offsets = [0, 0, 0], sizes = [1, 16, 1], strides = [1, 1, 1]} : vector<1x18x1xf32> to vector<1x16x1xf32>
    %7 = vector.broadcast %5 : f32 to vector<1x16x1xf32>
    %8 = arith.mulf %7, %6 : vector<1x16x1xf32>
    %c1 = arith.constant 1 : index
    %9 = memref.load %arg1[%c1] : memref<3xf32, #tpu.memory_space<smem>>
    %10 = vector.extract_strided_slice %4 {offsets = [0, 1, 0], sizes = [1, 16, 1], strides = [1, 1, 1]} : vector<1x18x1xf32> to vector<1x16x1xf32>
    %11 = vector.broadcast %9 : f32 to vector<1x16x1xf32>
    %12 = arith.mulf %11, %10 : vector<1x16x1xf32>
    %13 = arith.addf %8, %12 : vector<1x16x1xf32>
    %c2 = arith.constant 2 : index
    %14 = memref.load %arg1[%c2] : memref<3xf32, #tpu.memory_space<smem>>
    %15 = vector.extract_strided_slice %4 {offsets = [0, 2, 0], sizes = [1, 16, 1], strides = [1, 1, 1]} : vector<1x18x1xf32> to vector<1x16x1xf32>
    %16 = vector.broadcast %14 : f32 to vector<1x16x1xf32>
    %17 = arith.mulf %16, %15 : vector<1x16x1xf32>
    %18 = arith.addf %13, %17 : vector<1x16x1xf32>
    %19 = arith.negf %18 : vector<1x16x1xf32>
    %20 = math.exp %19 : vector<1x16x1xf32>
    %cst_4 = arith.constant 1.000000e+00 : f32
    %21 = vector.broadcast %cst_4 : f32 to vector<1x16x1xf32>
    %22 = arith.addf %21, %20 : vector<1x16x1xf32>
    %23 = arith.divf %21, %22 : vector<1x16x1xf32>
    %c0_5 = arith.constant 0 : index
    %c0_6 = arith.constant 0 : index
    %c0_7 = arith.constant 0 : index
    %24 = vector.load %arg2[%c0_5, %c0_6, %c0_7] : memref<1x16x256xf32, #tpu.memory_space<vmem>>, vector<1x16x256xf32>
    %25 = vector.broadcast %23 : vector<1x16x1xf32> to vector<1x16x256xf32>
    %26 = arith.mulf %24, %25 : vector<1x16x256xf32>
    %c0_8 = arith.constant 0 : index
    %c0_9 = arith.constant 0 : index
    %c0_10 = arith.constant 0 : index
    %27 = vector.load %arg3[%c0_8, %c0_9, %c0_10] : memref<1x16x256xf32, #tpu.memory_space<vmem>>, vector<1x16x256xf32>
    tpu.vector_store %arg3[%c0_8, %c0_9, %c0_10], %26 {strides = array<i32>} : memref<1x16x256xf32, #tpu.memory_space<vmem>>, vector<1x16x256xf32>,
    return
  }
  func.func @transform_0(%arg0: i32) -> i32 {
    %c0_i32 = arith.constant 0 : i32
    %c0_i32_0 = arith.constant 0 : i32
    return %c0_i32 : i32
  }
  func.func @transform_1(%arg0: i32) -> (i32, i32, i32) {
    %c0_i32 = arith.constant 0 : i32
    %c0_i32_0 = arith.constant 0 : i32
    %c0_i32_1 = arith.constant 0 : i32
    return %arg0, %c0_i32, %c0_i32_0 : i32, i32, i32
  }
  func.func @transform_2(%arg0: i32) -> (i32, i32, i32) {
    %c0_i32 = arith.constant 0 : i32
    %c0_i32_0 = arith.constant 0 : i32
    %c0_i32_1 = arith.constant 0 : i32
    return %arg0, %c0_i32, %c0_i32_0 : i32, i32, i32
  }
}

</mosaic_0001>

<llo_original>
// kernel: tpu_custom_call.1
$region0: #{tpu_custom_call.1}
  #allocation0 [shape = 'u32[]', space=smem, size = 0x4, offset = 0x4, fixed_abs, tag = 'smem constant byte address 0x4 - core index']
  #allocation1 [shape = 'u32[144,128]{1,0:T(1,128)}', space=vmem, size = 0x12000, scoped, tag = 'internal scratch']
  %s0 = inlined_call_operand.hbm [shape: f32[3], index: 0, kind: input, shape index: {}]
  %s1 = inlined_call_operand.hbm [shape: f32[2,16,256], index: 1, kind: input, shape index: {}]
  %s2 = inlined_call_operand.hbm [shape: f32[2,16,256], index: 2, kind: output, shape index: {}]
  %s3 = sld [smem:[#allocation0]]
  $region49: #{tpu_custom_call.1} parent=0
    _
  %s5 = ssub.s32 1, %s3
  %s6 = scalar_select 0, %s5, %s3
  $region1: #{tpu_custom_call.1} parent=0
    #allocation2 [shape = 'u8[512]{0}', space=smem, size = 0x200, scoped, tag = 'input window, operand 0, single buffered']
    #allocation3 [shape = 's32[2]{0}', space=sflag, size = 0x8, scoped, tag = 'scoped memory for tpu_custom_call.1']
    #allocation4 [shape = 's32[2]{0}', space=sflag, size = 0x8, scoped, tag = 'scoped memory for tpu_custom_call.1']
    #allocation5 [shape = 's32[2]{0}', space=sflag, size = 0x8, scoped, tag = 'scoped memory for tpu_custom_call.1']
    #allocation6 [shape = 'u8[32768]{0}', space=vmem, size = 0x8000, scoped, tag = 'input window, operand 1']
    #allocation7 [shape = 'u8[32768]{0}', space=vmem, size = 0x8000, scoped, tag = 'output window, operand 0']
    %7 = vsyncpa [#allocation5], 0
    %8 = vsyncpa [#allocation3], 0
    %s9 = scalar_lea.sflag [#allocation3], 1
    %10 = vsyncpa %s9, 0
    %11 = vsyncpa [#allocation4], 0
    %s12 = scalar_lea.sflag [#allocation4], 1
    %13 = vsyncpa %s12, 0
    loop: start=0, step=1, limit=4
    $region2: #{tpu_custom_call.1} parent=1 // loop_pre_header
      _
    $region3: #{tpu_custom_call.1} parent=1 // loop_header
      %s15 = sphi 0, %s19
      %p16 = scmp.ge.s32.totalorder %s15, 4
      %s23 = sphi 0, %s23
      %s25 = sphi 0, %s23
      %s26 = sphi 0, %s25
      %s40 = sphi 0, %s26
      %s46 = sphi 0, %s48
      %s49 = sphi 0, %s46
      %s50 = sphi 0, %s49
      %s66 = sphi 0, %s50
      %s72 = sphi 0, %s74
      %s75 = sphi 0, %s72
      %s76 = sphi 0, %s75
      %s92 = sphi 0, %s76
    $region4: #{tpu_custom_call.1} parent=1 // loop_header_branch
      %18 = sbr.rel (%p16) target = $region8
    $region5: #{tpu_custom_call.1} parent=1 // loop_body
      %s20 = ssub.s32 %s15, 1
      %s21 = ssub.s32 %s15, 2
      %s22 = sadd.s32 %s15, 1
      %s24 = sadd.s32 %s23, 1
      %p27 = scmp.eq.s32.totalorder %s15, 1
      %p28 = scmp.ne.s32.totalorder %s23, %s25
      %p29 = scmp.eq.s32.totalorder %s15, 0
      %p30 = por %p28, %p29
      %p31 = scmp.ne.s32.totalorder %s23, %s25
      %p32 = scmp.eq.s32.totalorder %s20, 1
      %p33 = por %p31, %p32
      %p34 = scmp.ne.s32.totalorder %s25, %s26
      %p35 = scmp.eq.s32.totalorder %s20, 0
      %p36 = por %p34, %p35
      %p37 = scmp.ne.s32.totalorder %s25, %s26
      %p38 = scmp.eq.s32.totalorder %s21, 1
      %p39 = por %p37, %p38
      %p41 = scmp.ne.s32.totalorder %s26, %s40
      %p42 = scmp.eq.s32.totalorder %s21, 0
      %p43 = por %p41, %p42
      %s44 = ssub.s32 %s15, %s22
      %p45 = scmp.eq.s32.totalorder %s44, 0
      %s47 = sadd.s32 %s46, 1
      %s48 = scalar_select %p45, %s46, %s47
      %p51 = pneg %p45
      %p52 = scmp.eq.s32.totalorder %s15, 1
      %p53 = por %p51, %p52
      %p54 = scmp.ne.s32.totalorder %s46, %s49
      %p55 = scmp.eq.s32.totalorder %s15, 0
      %p56 = por %p54, %p55
      %p57 = scmp.ne.s32.totalorder %s46, %s49
      %p58 = scmp.eq.s32.totalorder %s20, 1
      %p59 = por %p57, %p58
      %p60 = scmp.ne.s32.totalorder %s49, %s50
      %p61 = scmp.eq.s32.totalorder %s20, 0
      %p62 = por %p60, %p61
      %p63 = scmp.ne.s32.totalorder %s49, %s50
      %p64 = scmp.eq.s32.totalorder %s21, 1
      %p65 = por %p63, %p64
      %p67 = scmp.ne.s32.totalorder %s50, %s66
      %p68 = scmp.eq.s32.totalorder %s21, 0
      %p69 = por %p67, %p68
      %s70 = ssub.s32 %s15, %s22
      %p71 = scmp.eq.s32.totalorder %s70, 0
      %s73 = sadd.s32 %s72, 1
      %s74 = scalar_select %p71, %s72, %s73
      %p77 = pneg %p71
      %p78 = scmp.eq.s32.totalorder %s15, 1
      %p79 = por %p77, %p78
      %p80 = scmp.ne.s32.totalorder %s72, %s75
      %p81 = scmp.eq.s32.totalorder %s15, 0
      %p82 = por %p80, %p81
      %p83 = scmp.ne.s32.totalorder %s72, %s75
      %p84 = scmp.eq.s32.totalorder %s20, 1
      %p85 = por %p83, %p84
      %p86 = scmp.ne.s32.totalorder %s75, %s76
      %p87 = scmp.eq.s32.totalorder %s20, 0
      %p88 = por %p86, %p87
      %p89 = scmp.ne.s32.totalorder %s75, %s76
      %p90 = scmp.eq.s32.totalorder %s21, 1
      %p91 = por %p89, %p90
      %p93 = scmp.ne.s32.totalorder %s76, %s92
      %p94 = scmp.eq.s32.totalorder %s21, 0
      %p95 = por %p93, %p94
      %p96 = scmp.le.s32.totalorder 1, %s15
      %p97 = scmp.lt.s32.totalorder %s15, 3
      %p98 = pnand %p96, %p97
      %p99 = pneg %p98
      // Predicated region
      $region9: #{tpu_custom_call.1} parent=5 // pred_check
        _
      $region10: #{tpu_custom_call.1} parent=5 // pred_check_branch
        %101 = sbr.rel (%p98) target = $region12
      $region11: #{tpu_custom_call.1} parent=5 // pred_region
        %s102 = ssub.s32 %s15, 1
        // Predicated region
        $region13: #{tpu_custom_call.1} parent=11 // pred_check
          %p103 = pneg %p36
        $region14: #{tpu_custom_call.1} parent=11 // pred_check_branch
          %105 = sbr.rel (%p103) target = $region16
        $region15: #{tpu_custom_call.1} parent=11 // pred_region
          %s107 = ssub.s32 16, 16
          %108 = vsyncadd [#allocation5], %s107
          %111 = dma.hbm_to_smem %s0, 16, [#allocation2], [#allocation5]
        $region16: #{tpu_custom_call.1} parent=11 // pred_fallthru
          _
      $region12: #{tpu_custom_call.1} parent=5 // pred_fallthru
        _
      %p112 = scmp.lt.s32.totalorder %s15, 2
      // Predicated region
      $region17: #{tpu_custom_call.1} parent=5 // pred_check
        %p113 = pneg %p112
      $region18: #{tpu_custom_call.1} parent=5 // pred_check_branch
        %115 = sbr.rel (%p113) target = $region20
      $region19: #{tpu_custom_call.1} parent=5 // pred_region
        // Predicated region
        $region21: #{tpu_custom_call.1} parent=19 // pred_check
          %p116 = pneg %p56
        $region22: #{tpu_custom_call.1} parent=19 // pred_check_branch
          %118 = sbr.rel (%p116) target = $region24
        $region23: #{tpu_custom_call.1} parent=19 // pred_region
          %s119 = sand.u32 %s46, 1
          %s120 = scalar_lea.sflag [#allocation3], %s119
          %s121 = sand.u32 %s46, 1
          %s122 = smul.addr %s121, 32
          %s123 = scalar_lea.vmem [#allocation6], %s122
          %s125 = ssub.s32 512, 512
          %126 = vsyncadd %s120, %s125
          %s127 = smul.addr %s15, 4
          %s128 = smul.addr %s127, 128
          %s129 = scalar_lea.hbm %s1, %s128
          %s130 = sshll.u32 %s123, 4
          %s131 = int_to_ptr.vmem [resolvable:$true] %s130
          %136 = dma.hbm_to_vmem [thread:$0]  %s129, 512, %s131, %s120, 256, 256, 16
        $region24: #{tpu_custom_call.1} parent=19 // pred_fallthru
          _
      $region20: #{tpu_custom_call.1} parent=5 // pred_fallthru
        _
      %p137 = scmp.le.s32.totalorder 1, %s15
      %p138 = scmp.lt.s32.totalorder %s15, 3
      %p139 = pnand %p137, %p138
      %p140 = pneg %p139
      // Predicated region
      $region25: #{tpu_custom_call.1} parent=5 // pred_check
        _
      $region26: #{tpu_custom_call.1} parent=5 // pred_check_branch
        %142 = sbr.rel (%p139) target = $region28
      $region27: #{tpu_custom_call.1} parent=5 // pred_region
        %s143 = ssub.s32 %s15, 1
        // Predicated region
        $region29: #{tpu_custom_call.1} parent=27 // pred_check
          %p144 = pneg %p36
        $region30: #{tpu_custom_call.1} parent=27 // pred_check_branch
          %146 = sbr.rel (%p144) target = $region32
        $region31: #{tpu_custom_call.1} parent=27 // pred_region
          %147 = dma.done [#allocation5], 16
        $region32: #{tpu_custom_call.1} parent=27 // pred_fallthru
          _
        %s148 = sand.u32 %s49, 1
        %s149 = scalar_lea.sflag [#allocation3], %s148
        %s150 = sand.u32 %s49, 1
        %s151 = smul.addr %s150, 32
        %s152 = scalar_lea.vmem [#allocation6], %s151
        // Predicated region
        $region33: #{tpu_custom_call.1} parent=27 // pred_check
          %p153 = pneg %p62
        $region34: #{tpu_custom_call.1} parent=27 // pred_check_branch
          %155 = sbr.rel (%p153) target = $region36
        $region35: #{tpu_custom_call.1} parent=27 // pred_region
          %156 = dma.done %s149, 512
        $region36: #{tpu_custom_call.1} parent=27 // pred_fallthru
          _
        %157 = sfence
        %p158 = pneg %p36
        %p159 = pneg %p33
        %s160 = sand.u32 %s49, 1
        %s161 = scalar_lea.sflag [#allocation3], %s160
        %s162 = sand.u32 %s49, 1
        %s163 = smul.addr %s162, 32
        %s164 = scalar_lea.vmem [#allocation6], %s163
        %p165 = pneg %p62
        %p166 = pneg %p59
        %p167 = pneg %p88
        %p168 = pneg %p85
        %s169 = sand.u32 %s75, 1
        %s170 = scalar_lea.sflag [#allocation4], %s169
        %s171 = sand.u32 %s75, 1
        %s172 = smul.addr %s171, 32
        %s173 = scalar_lea.vmem [#allocation7], %s172
        %v174 = vld [vmem:[%s152] sm:$0xff]
        %v175 = vld [vmem:[%s152 + $0x8] sm:$0xff]
        %v176 = vld [vmem:[%s152 + $0x10] sm:$0xff]
        %v177 = vld [vmem:[%s152 + $0x18] sm:$0xff]
        %v178 = vadd.f32 %v174, %v175
        %179 = vadd.xlane.f32.xlu0 %v178
        %v180 = vpop.xlane.xlu0 %179
        %v181 = vadd.f32 %v176, %v177
        %182 = vadd.xlane.f32.xlu0 %v181
        %v183 = vpop.xlane.xlu0 %182
        %vm186 = vcmask 1040384
        %v187 = vrot.slane %v180, 7
        %v188 = vrot.slane %v183, 7
        %v189 = vsel %vm186, %v187, %v188
        %v193 = vsel %vm186, 0.0, %v187
        %v194 = vsel %vm186, %v188, 0.0
        %s195 = sld [smem:[#allocation2]]
        %v196 = vstv %s195
        %v197 = vmul.f32 %v196, %v193
        %v198 = vmul.f32 %v196, %v189
        %s199 = sld [smem:[#allocation2 + $0x1]]
        %v200 = vstv %s199
        %v201 = vmul.f32 %v200, %v193
        %v202 = vmul.f32 %v200, %v189
        %v203 = vmul.f32 %v200, %v194
        %vm207 = vcmask 1046528
        %v208 = vrot.slane %v201, 1
        %v209 = vrot.slane %v202, 1
        %v210 = vsel %vm207, %v208, %v209
        %v211 = vrot.slane %v203, 1
        %v212 = vsel %vm207, %v209, %v211
        %v215 = vadd.f32 %v197, %v210
        %v216 = vadd.f32 %v198, %v212
        %s217 = sld [smem:[#allocation2 + $0x2]]
        %v218 = vstv %s217
        %v219 = vmul.f32 %v218, %v193
        %v220 = vmul.f32 %v218, %v189
        %v221 = vmul.f32 %v218, %v194
        %vm225 = vcmask 1045504
        %v226 = vrot.slane %v219, 2
        %v227 = vrot.slane %v220, 2
        %v228 = vsel %vm225, %v226, %v227
        %v229 = vrot.slane %v221, 2
        %v230 = vsel %vm225, %v227, %v229
        %v233 = vadd.f32 %v215, %v228
        %v234 = vadd.f32 %v216, %v230
        %v235 = vxor.u32 %v233, 2147483648
        %v236 = vxor.u32 %v234, 2147483648
        %v237 = vmul.f32 %v235, 1.442695
        %v238 = vpow.pop %v237
        %v239 = vmul.f32 %v236, 1.442695
        %v240 = vpow.pop %v239
        %v241 = vadd.f32 %v238, 1.0
        %v242 = vadd.f32 %v240, 1.0
        %v243 = vrcp.pop %v241
        %v244 = vmul.f32 1.0, %v243
        %v245 = vrcp.pop %v242
        %v246 = vmul.f32 1.0, %v245
        %248 = vset.pattern.permute.xlu0 0
        %249 = vperm.xlu0 %248, %v244
        %v250 = vpop.permute.xlu0 %249
        %253 = vset.pattern.permute.xlu0 0
        %254 = vperm.xlu0 %253, %v246
        %v255 = vpop.permute.xlu0 %254
        %v257 = vmul.f32 %v174, %v250
        %v258 = vmul.f32 %v175, %v250
        %v259 = vmul.f32 %v176, %v255
        %v260 = vmul.f32 %v177, %v255
        %261 = vst [vmem:[%s173] sm:$0xff] %v257
        %262 = vst [vmem:[%s173 + $0x8] sm:$0xff] %v258
        %263 = vst [vmem:[%s173 + $0x10] sm:$0xff] %v259
        %264 = vst [vmem:[%s173 + $0x18] sm:$0xff] %v260
        %s265 = sand.u32 %s75, 1
        %s266 = scalar_lea.sflag [#allocation4], %s265
        %s267 = sand.u32 %s75, 1
        %s268 = smul.addr %s267, 32
        %s269 = scalar_lea.vmem [#allocation7], %s268
        // Predicated region
        $region37: #{tpu_custom_call.1} parent=27 // pred_check
          %p270 = pneg %p85
        $region38: #{tpu_custom_call.1} parent=27 // pred_check_branch
          %272 = sbr.rel (%p270) target = $region40
        $region39: #{tpu_custom_call.1} parent=27 // pred_region
          %s274 = ssub.s32 512, 512
          %275 = vsyncadd %s266, %s274
          %s276 = smul.addr %s20, 4
          %s277 = smul.addr %s276, 128
          %s278 = scalar_lea.hbm %s2, %s277
          %s279 = sshll.u32 %s269, 4
          %s280 = int_to_ptr.vmem [resolvable:$true] %s279
          %285 = dma.vmem_to_hbm [thread:$0]  %s280, 512, %s278, %s266, 256, 256, 16
        $region40: #{tpu_custom_call.1} parent=27 // pred_fallthru
          _
      $region28: #{tpu_custom_call.1} parent=5 // pred_fallthru
        _
      %p286 = scmp.le.s32.totalorder 2, %s15
      // Predicated region
      $region41: #{tpu_custom_call.1} parent=5 // pred_check
        %p287 = pneg %p286
      $region42: #{tpu_custom_call.1} parent=5 // pred_check_branch
        %289 = sbr.rel (%p287) target = $region44
      $region43: #{tpu_custom_call.1} parent=5 // pred_region
        %s290 = ssub.s32 %s15, 2
        // Predicated region
        $region45: #{tpu_custom_call.1} parent=43 // pred_check
          %p291 = pneg %p91
        $region46: #{tpu_custom_call.1} parent=43 // pred_check_branch
          %293 = sbr.rel (%p291) target = $region48
        $region47: #{tpu_custom_call.1} parent=43 // pred_region
          %s294 = sand.u32 %s76, 1
          %s295 = scalar_lea.sflag [#allocation4], %s294
          %s296 = sand.u32 %s76, 1
          %s297 = smul.addr %s296, 32
          %s298 = scalar_lea.vmem [#allocation7], %s297
          %299 = dma.done %s295, 512
        $region48: #{tpu_custom_call.1} parent=43 // pred_fallthru
          _
      $region44: #{tpu_custom_call.1} parent=5 // pred_fallthru
        _
    $region6: #{tpu_custom_call.1} parent=1 // loop_footer
      %s19 = sadd.s32 1, %s15
    $region7: #{tpu_custom_call.1} parent=1 // loop_footer_branch
      %14 = sbr.rel target = $region3
    $region8: #{tpu_custom_call.1} parent=1 // loop_exit
      _
    %300 = vsyncpa [#allocation3], 1
    %s301 = scalar_lea.sflag [#allocation3], 1
    %302 = vsyncpa %s301, 1
    %303 = vsyncpa [#allocation4], 1
    %s304 = scalar_lea.sflag [#allocation4], 1
    %305 = vsyncpa %s304, 1
    %306 = vsyncpa [#allocation5], 1
    %s307 = scalar_lea.sflag [#allocation5], 1
    %308 = vsyncpa %s307, 1

</llo_original>
